<compile_context>
chip_gen: v7x
topology: tpu7x:2x2x1
jax: 0.10.0
libtpu: 0.0.40
codegen_flags: <defaults>
</compile_context>

<pallas_src>
import functools

import jax
import jax.numpy as jnp
from jax import lax
from jax.experimental import pallas as pl
from jax.experimental.pallas import tpu as pltpu

TEMPERATURE = 2.0     # RnCLoss(temperature=2)
_EPS = 1e-4           # the reference's "+ 0.0001" inside the pairwise difference
_LOG_OFFSET = 1e-3    # the reference's "+ 0.001" inside the log


def _rnc_loss_kernel(f_tile_ref, f_all_t_ref, lab_tile_ref, lab_all_t_ref,
                     rowloss_ref, *, temperature):
    tm, d = f_tile_ref.shape           # rows in this tile, feature dim
    n = f_all_t_ref.shape[1]           # total number of samples
    c = lab_tile_ref.shape[1]          # number of label components (tiny)
    i0 = pl.program_id(0) * tm         # first global row handled by this tile

    f_t = f_tile_ref[...]              # [tm, d]  rows of this tile
    f_all_t = f_all_t_ref[...]         # [d, n]   all rows, pre-transposed (wrapper)
    lab_t = lab_tile_ref[...]          # [tm, c]
    lab_all_t = lab_all_t_ref[...]     # [c, n]

    # ---- pairwise L2 similarity via the Gram identity (MXU) ----------------
    #   ||f_i - f_j + eps||^2 = |f_i|^2 + |f_j|^2 - 2 f_i.f_j
    #                           + 2*eps*(sum(f_i) - sum(f_j)) + d*eps^2
    g = lax.dot_general(f_t, f_all_t, (((1,), (0,)), ((), ())),
                        preferred_element_type=jnp.float32,
                        precision=lax.Precision.HIGHEST)              # [tm, n]
    sq_r = jnp.sum(f_t * f_t, axis=1, keepdims=True)                  # [tm, 1]
    s_r = jnp.sum(f_t, axis=1, keepdims=True)                         # [tm, 1]
    sq_c = jnp.sum(f_all_t * f_all_t, axis=0, keepdims=True)          # [1, n]
    s_c = jnp.sum(f_all_t, axis=0, keepdims=True)                     # [1, n]
    d2 = (sq_r + sq_c - 2.0 * g
          + (2.0 * _EPS) * (s_r - s_c) + float(d) * (_EPS * _EPS))
    d2 = jnp.maximum(d2, 0.0)          # guard tiny negative cancellation -> NaN
    logits = -jnp.sqrt(d2) * (1.0 / temperature)                      # [tm, n]

    # ---- pairwise L1 label differences, one lane-dense [tm, n] per component
    ld = jnp.zeros((tm, n), jnp.float32)
    for ci in range(c):                # c is tiny and static -> unrolled
        ld = ld + jnp.abs(lab_t[:, ci:ci + 1] - lab_all_t[ci:ci + 1, :])

    # exp(logits) with the j == i diagonal removed once (single select)
    row_ids = i0 + lax.broadcasted_iota(jnp.int32, (tm, n), 0)        # global row
    col_ids = lax.broadcasted_iota(jnp.int32, (tm, n), 1)
    exp_od = jnp.where(row_ids != col_ids, jnp.exp(logits), 0.0)      # [tm, n]

    # ---- loop over "positive" columns k, batched K_TILE at a time ----------
    # n is a compile-time constant, so this is a fully-unrolled static loop and
    # the column slices of ld / logits are static lane slices (no one-hot work).
    k_tile = min(n, 16)
    row_acc = jnp.zeros((tm, 1), jnp.float32)
    for k0 in range(0, n, k_tile):
        kt = min(k_tile, n - k0)
        pos_ld = ld[:, k0:k0 + kt]                                    # [tm, kt]
        pos_lg = logits[:, k0:k0 + kt]                                # [tm, kt]
        # tmp[i,k] = sum_{j != i} [ld(i,j) >= ld(i,k)] * exp(logits(i,j))
        keep = ld[:, None, :] >= pos_ld[:, :, None]                   # [tm, kt, n]
        tmp = jnp.sum(jnp.where(keep, exp_od[:, None, :], 0.0), axis=-1)
        plp = pos_lg - jnp.log(tmp + _LOG_OFFSET)                     # [tm, kt]
        k_ids = k0 + lax.broadcasted_iota(jnp.int32, (tm, kt), 1)
        r_ids = i0 + lax.broadcasted_iota(jnp.int32, (tm, kt), 0)
        valid = (r_ids != k_ids) & (r_ids < n)    # drop i == k and padded rows
        row_acc = row_acc + jnp.sum(jnp.where(valid, plp, 0.0),
                                    axis=1, keepdims=True)

    rowloss_ref[...] = row_acc         # per-row partial sums; reduced in wrapper


def rnc_loss(features, labels, temperature=TEMPERATURE):
    """features: [n, d] float32, labels: [n, c] float32 -> scalar float32 loss."""
    features = jnp.asarray(features, jnp.float32)
    labels = jnp.asarray(labels, jnp.float32)
    n, d = features.shape
    c = labels.shape[1]

    tm = n if n <= 128 else 128                 # row-tile size
    num_tiles = (n + tm - 1) // tm

    kernel = functools.partial(_rnc_loss_kernel, temperature=float(temperature))
    row_losses = pl.pallas_call(
        kernel,
        out_shape=jax.ShapeDtypeStruct((num_tiles * tm, 1), jnp.float32),
        grid=(num_tiles,),
        in_specs=[
            pl.BlockSpec((tm, d), lambda i: (i, 0)),   # row tile of features
            pl.BlockSpec((d, n), lambda i: (0, 0)),    # features^T, full, resident
            pl.BlockSpec((tm, c), lambda i: (i, 0)),   # row tile of labels
            pl.BlockSpec((c, n), lambda i: (0, 0)),    # labels^T, full, resident
        ],
        out_specs=pl.BlockSpec((tm, 1), lambda i: (i, 0)),
        compiler_params=pltpu.CompilerParams(
            dimension_semantics=("parallel",)),        # row tiles are independent
    )(features, features.T, labels, labels.T)

    # Padded rows (last partial tile) contribute exactly 0.
    return -jnp.sum(row_losses) / (n * (n - 1))


def rnc_loss_ref(features, labels, t=TEMPERATURE):
    """Pure-JAX reference mirroring the PyTorch code exactly (off-diag gather and all)."""
    ld = jnp.sum(jnp.abs(labels[:, None, :] - labels[None, :, :]), axis=-1)
    sim = -jnp.sqrt(jnp.sum((features[:, None, :] - features[None, :, :] + 1e-4) ** 2, axis=-1))
    logits = sim / t
    exp_logits = jnp.exp(logits)
    n = logits.shape[0]
    mask = ~jnp.eye(n, dtype=bool)
    logits_od = logits[mask].reshape(n, n - 1)
    exp_od = exp_logits[mask].reshape(n, n - 1)
    ld_od = ld[mask].reshape(n, n - 1)
    loss = 0.0
    for k in range(n - 1):
        pos_logits = logits_od[:, k]
        pos_ld = ld_od[:, k]
        neg_mask = (ld_od >= pos_ld[:, None]).astype(jnp.float32)
        tmp = jnp.sum(neg_mask * exp_od, axis=-1)
        pos_log_probs = pos_logits - jnp.log(tmp + 0.001)
        loss = loss - jnp.sum(pos_log_probs / (n * (n - 1)))
    return loss


if __name__ == "__main__":
    # Small deterministic inputs: n=8 samples, feature dim=32, label dim=2.
    key = jax.random.PRNGKey(0)
    kf, kl = jax.random.split(key)
    features = jax.random.normal(kf, (8, 32), dtype=jnp.float32)
    labels = jax.random.normal(kl, (8, 2), dtype=jnp.float32)

    loss = rnc_loss(features, labels)
    jax.block_until_ready(loss)

    ref = rnc_loss_ref(features, labels)
    # fp32-contract MXU path stays ~1e-6 of the broadcast reference; 1e-3 is margin.
    assert jnp.allclose(loss, ref, rtol=1e-3, atol=1e-3), (loss, ref)
    print("KERNEL_OK")
</pallas_src>

<mosaic_0001>
module attributes {stable_mosaic.version = 11 : i64} {
  func.func @_rnc_loss_kernel(%arg0: i32, %arg1: memref<8x32xf32, #tpu.memory_space<vmem>>, %arg2: memref<32x8xf32, #tpu.memory_space<vmem>>, %arg3: memref<8x2xf32, #tpu.memory_space<vmem>>, %arg4: memref<2x8xf32, #tpu.memory_space<vmem>>, %arg5: memref<8x1xf32, #tpu.memory_space<vmem>>) attributes {dimension_semantics = [#tpu.dimension_semantics<parallel>], iteration_bounds = array<i64: 1>, scalar_prefetch = 0 : i64, scratch_operands = 0 : i64, tpu.core_type = #tpu.core_type<tc>, window_params = [{transform_indices = @transform_0, window_bounds = array<i64: 8, 32>}, {pipeline_mode = #tpu.pipeline_mode<synchronous>, transform_indices = @transform_1, window_bounds = array<i64: 32, 8>}, {transform_indices = @transform_2, window_bounds = array<i64: 8, 2>}, {pipeline_mode = #tpu.pipeline_mode<synchronous>, transform_indices = @transform_3, window_bounds = array<i64: 2, 8>}, {transform_indices = @transform_4, window_bounds = array<i64: 8, 1>}]} {
    %c8_i32 = arith.constant 8 : i32
    %0 = arith.muli %arg0, %c8_i32 : i32
    %c0 = arith.constant 0 : index
    %c0_0 = arith.constant 0 : index
    %1 = vector.load %arg1[%c0, %c0_0] : memref<8x32xf32, #tpu.memory_space<vmem>>, vector<8x32xf32>
    %c0_1 = arith.constant 0 : index
    %c0_2 = arith.constant 0 : index
    %2 = vector.load %arg2[%c0_1, %c0_2] : memref<32x8xf32, #tpu.memory_space<vmem>>, vector<32x8xf32>
    %c0_3 = arith.constant 0 : index
    %c0_4 = arith.constant 0 : index
    %3 = vector.load %arg3[%c0_3, %c0_4] : memref<8x2xf32, #tpu.memory_space<vmem>>, vector<8x2xf32>
    %c0_5 = arith.constant 0 : index
    %c0_6 = arith.constant 0 : index
    %4 = vector.load %arg4[%c0_5, %c0_6] : memref<2x8xf32, #tpu.memory_space<vmem>>, vector<2x8xf32>
    %cst = arith.constant dense<0.000000e+00> : vector<8x8xf32>
    %5 = tpu.matmul %1, %2, %cst {dimension_numbers = #tpu.dot_dimension_numbers<[1], [0], [0], [1], [0, 0, 1, 1], [], []>, precision = #tpu.contract_precision<fp32>} : vector<8x32xf32>, vector<32x8xf32>, vector<8x8xf32> -> vector<8x8xf32>
    %6 = arith.mulf %1, %1 : vector<8x32xf32>
    %cst_7 = arith.constant dense<0.000000e+00> : vector<8xf32>
    %7 = vector.multi_reduction <add>, %6, %cst_7 [1] : vector<8x32xf32> to vector<8xf32>
    %8 = vector.shape_cast %7 : vector<8xf32> to vector<8x1xf32>
    %cst_8 = arith.constant dense<0.000000e+00> : vector<8xf32>
    %9 = vector.multi_reduction <add>, %1, %cst_8 [1] : vector<8x32xf32> to vector<8xf32>
    %10 = vector.shape_cast %9 : vector<8xf32> to vector<8x1xf32>
    %11 = arith.mulf %2, %2 : vector<32x8xf32>
    %cst_9 = arith.constant dense<0.000000e+00> : vector<8xf32>
    %12 = vector.multi_reduction <add>, %11, %cst_9 [0] : vector<32x8xf32> to vector<8xf32>
    %13 = vector.shape_cast %12 : vector<8xf32> to vector<1x8xf32>
    %cst_10 = arith.constant dense<0.000000e+00> : vector<8xf32>
    %14 = vector.multi_reduction <add>, %2, %cst_10 [0] : vector<32x8xf32> to vector<8xf32>
    %15 = vector.shape_cast %14 : vector<8xf32> to vector<1x8xf32>
    %16 = vector.broadcast %8 : vector<8x1xf32> to vector<8x8xf32>
    %17 = vector.broadcast %13 : vector<1x8xf32> to vector<8x8xf32>
    %18 = arith.addf %16, %17 : vector<8x8xf32>
    %cst_11 = arith.constant 2.000000e+00 : f32
    %19 = vector.broadcast %cst_11 : f32 to vector<8x8xf32>
    %20 = arith.mulf %19, %5 : vector<8x8xf32>
    %21 = arith.subf %18, %20 : vector<8x8xf32>
    %22 = vector.broadcast %10 : vector<8x1xf32> to vector<8x8xf32>
    %23 = vector.broadcast %15 : vector<1x8xf32> to vector<8x8xf32>
    %24 = arith.subf %22, %23 : vector<8x8xf32>
    %cst_12 = arith.constant 2.000000e-04 : f32
    %25 = vector.broadcast %cst_12 : f32 to vector<8x8xf32>
    %26 = arith.mulf %25, %24 : vector<8x8xf32>
    %27 = arith.addf %21, %26 : vector<8x8xf32>
    %cst_13 = arith.constant 3.200000e-07 : f32
    %28 = vector.broadcast %cst_13 : f32 to vector<8x8xf32>
    %29 = arith.addf %27, %28 : vector<8x8xf32>
    %cst_14 = arith.constant 0.000000e+00 : f32
    %30 = vector.broadcast %cst_14 : f32 to vector<8x8xf32>
    %31 = arith.maximumf %29, %30 : vector<8x8xf32>
    %32 = math.sqrt %31 : vector<8x8xf32>
    %cst_15 = arith.constant 0.000000e+00 : f32
    %33 = vector.broadcast %cst_15 : f32 to vector<8x8xf32>
    %34 = arith.subf %33, %32 : vector<8x8xf32>
    %cst_16 = arith.constant 5.000000e-01 : f32
    %35 = vector.broadcast %cst_16 : f32 to vector<8x8xf32>
    %36 = arith.mulf %34, %35 : vector<8x8xf32>
    %cst_17 = arith.constant 0.000000e+00 : f32
    %37 = vector.broadcast %cst_17 : f32 to vector<8x8xf32>
    %38 = vector.extract_strided_slice %3 {offsets = [0, 0], sizes = [8, 1], strides = [1, 1]} : vector<8x2xf32> to vector<8x1xf32>
    %39 = vector.extract_strided_slice %4 {offsets = [0, 0], sizes = [1, 8], strides = [1, 1]} : vector<2x8xf32> to vector<1x8xf32>
    %40 = vector.broadcast %38 : vector<8x1xf32> to vector<8x8xf32>
    %41 = vector.broadcast %39 : vector<1x8xf32> to vector<8x8xf32>
    %42 = arith.subf %40, %41 : vector<8x8xf32>
    %43 = math.absf %42 : vector<8x8xf32>
    %44 = arith.addf %37, %43 : vector<8x8xf32>
    %45 = vector.extract_strided_slice %3 {offsets = [0, 1], sizes = [8, 1], strides = [1, 1]} : vector<8x2xf32> to vector<8x1xf32>
    %46 = vector.extract_strided_slice %4 {offsets = [1, 0], sizes = [1, 8], strides = [1, 1]} : vector<2x8xf32> to vector<1x8xf32>
    %47 = vector.broadcast %45 : vector<8x1xf32> to vector<8x8xf32>
    %48 = vector.broadcast %46 : vector<1x8xf32> to vector<8x8xf32>
    %49 = arith.subf %47, %48 : vector<8x8xf32>
    %50 = math.absf %49 : vector<8x8xf32>
    %51 = arith.addf %44, %50 : vector<8x8xf32>
    %52 = tpu.iota {dimensions = array<i32: 0>} : vector<8x8xi32>
    %53 = vector.broadcast %0 : i32 to vector<8x8xi32>
    %54 = arith.addi %53, %52 : vector<8x8xi32>
    %55 = tpu.iota {dimensions = array<i32: 1>} : vector<8x8xi32>
    %56 = arith.cmpi ne, %54, %55 : vector<8x8xi32>
    %57 = math.exp %36 : vector<8x8xf32>
    %cst_18 = arith.constant 0.000000e+00 : f32
    %58 = vector.broadcast %cst_18 : f32 to vector<8x8xf32>
    %59 = arith.select %56, %57, %58 : vector<8x8xi1>, vector<8x8xf32>
    %cst_19 = arith.constant 0.000000e+00 : f32
    %60 = vector.broadcast %cst_19 : f32 to vector<8x1xf32>
    %61 = vector.shape_cast %51 : vector<8x8xf32> to vector<8x1x8xf32>
    %62 = vector.shape_cast %51 : vector<8x8xf32> to vector<8x8x1xf32>
    %63 = vector.broadcast %61 : vector<8x1x8xf32> to vector<8x8x8xf32>
    %64 = vector.broadcast %62 : vector<8x8x1xf32> to vector<8x8x8xf32>
    %65 = arith.cmpf oge, %63, %64 : vector<8x8x8xf32>
    %66 = vector.shape_cast %59 : vector<8x8xf32> to vector<8x1x8xf32>
    %cst_20 = arith.constant 0.000000e+00 : f32
    %67 = vector.shape_cast %66 : vector<8x1x8xf32> to vector<8x1x8xf32>
    %68 = vector.broadcast %67 : vector<8x1x8xf32> to vector<8x8x8xf32>
    %69 = vector.broadcast %cst_20 : f32 to vector<8x8x8xf32>
    %70 = arith.select %65, %68, %69 : vector<8x8x8xi1>, vector<8x8x8xf32>
    %cst_21 = arith.constant dense<0.000000e+00> : vector<8x8xf32>
    %71 = vector.multi_reduction <add>, %70, %cst_21 [2] : vector<8x8x8xf32> to vector<8x8xf32>
    %cst_22 = arith.constant 1.000000e-03 : f32
    %72 = vector.broadcast %cst_22 : f32 to vector<8x8xf32>
    %73 = arith.addf %71, %72 : vector<8x8xf32>
    %74 = math.log %73 : vector<8x8xf32>
    %75 = arith.subf %36, %74 : vector<8x8xf32>
    %76 = tpu.iota {dimensions = array<i32: 1>} : vector<8x8xi32>
    %c0_i32 = arith.constant 0 : i32
    %77 = vector.broadcast %c0_i32 : i32 to vector<8x8xi32>
    %78 = arith.addi %77, %76 : vector<8x8xi32>
    %79 = tpu.iota {dimensions = array<i32: 0>} : vector<8x8xi32>
    %80 = vector.broadcast %0 : i32 to vector<8x8xi32>
    %81 = arith.addi %80, %79 : vector<8x8xi32>
    %82 = arith.cmpi ne, %81, %78 : vector<8x8xi32>
    %c8_i32_23 = arith.constant 8 : i32
    %83 = vector.broadcast %c8_i32_23 : i32 to vector<8x8xi32>
    %84 = arith.cmpi slt, %81, %83 : vector<8x8xi32>
    %85 = arith.andi %82, %84 : vector<8x8xi1>
    %cst_24 = arith.constant 0.000000e+00 : f32
    %86 = vector.broadcast %cst_24 : f32 to vector<8x8xf32>
    %87 = arith.select %85, %75, %86 : vector<8x8xi1>, vector<8x8xf32>
    %cst_25 = arith.constant dense<0.000000e+00> : vector<8xf32>
    %88 = vector.multi_reduction <add>, %87, %cst_25 [1] : vector<8x8xf32> to vector<8xf32>
    %89 = vector.shape_cast %88 : vector<8xf32> to vector<8x1xf32>
    %90 = arith.addf %60, %89 : vector<8x1xf32>
    %c0_26 = arith.constant 0 : index
    %c0_27 = arith.constant 0 : index
    %91 = vector.load %arg5[%c0_26, %c0_27] : memref<8x1xf32, #tpu.memory_space<vmem>>, vector<8x1xf32>
    tpu.vector_store %arg5[%c0_26, %c0_27], %90 {strides = array<i32>} : memref<8x1xf32, #tpu.memory_space<vmem>>, vector<8x1xf32>,
    return
  }
  func.func @transform_0(%arg0: i32) -> (i32, i32) {
    %c0_i32 = arith.constant 0 : i32
    %c0_i32_0 = arith.constant 0 : i32
    return %arg0, %c0_i32 : i32, i32
  }
  func.func @transform_1(%arg0: i32) -> (i32, i32) {
    %c0_i32 = arith.constant 0 : i32
    %c0_i32_0 = arith.constant 0 : i32
    %c0_i32_1 = arith.constant 0 : i32
    return %c0_i32, %c0_i32_0 : i32, i32
  }
  func.func @transform_2(%arg0: i32) -> (i32, i32) {
    %c0_i32 = arith.constant 0 : i32
    %c0_i32_0 = arith.constant 0 : i32
    return %arg0, %c0_i32 : i32, i32
  }
  func.func @transform_3(%arg0: i32) -> (i32, i32) {
    %c0_i32 = arith.constant 0 : i32
    %c0_i32_0 = arith.constant 0 : i32
    %c0_i32_1 = arith.constant 0 : i32
    return %c0_i32, %c0_i32_0 : i32, i32
  }
  func.func @transform_4(%arg0: i32) -> (i32, i32) {
    %c0_i32 = arith.constant 0 : i32
    %c0_i32_0 = arith.constant 0 : i32
    return %arg0, %c0_i32 : i32, i32
  }
}

</mosaic_0001>

<llo_original>
// kernel: tpu_custom_call.1
$region0: #{tpu_custom_call.1}
  #allocation0 [shape = 'u32[]', space=smem, size = 0x4, offset = 0x4, fixed_abs, tag = 'smem constant byte address 0x4 - core index']
  #allocation1 [shape = 'u32[144,128]{1,0:T(1,128)}', space=vmem, size = 0x12000, scoped, tag = 'internal scratch']
  %s0 = inlined_call_operand.vmem [shape: f32[8,32], index: 0, kind: input, shape index: {}]
  %s1 = inlined_call_operand.vmem [shape: f32[32,8], index: 1, kind: input, shape index: {}]
  %s2 = inlined_call_operand.vmem [shape: f32[8,2], index: 2, kind: input, shape index: {}]
  %s3 = inlined_call_operand.vmem [shape: f32[2,8], index: 3, kind: input, shape index: {}]
  %s4 = inlined_call_operand.vmem [shape: f32[8,1], index: 4, kind: output, shape index: {}]
  %s5 = sld [smem:[#allocation0]]
  $region26: #{tpu_custom_call.1} parent=0
    _
  %s7 = ssub.s32 1, %s5
  %s8 = scalar_select 0, %s7, %s5
  // Predicated region
  $region2: #{tpu_custom_call.1} parent=0 // pred_check
    _
  $region3: #{tpu_custom_call.1} parent=0 // pred_check_branch
    %10 = sbr.rel (0) target = $region5
  $region4: #{tpu_custom_call.1} parent=0 // pred_region
    _
  $region5: #{tpu_custom_call.1} parent=0 // pred_fallthru
    _
  // Predicated region
  $region6: #{tpu_custom_call.1} parent=0 // pred_check
    _
  $region7: #{tpu_custom_call.1} parent=0 // pred_check_branch
    %12 = sbr.rel (0) target = $region9
  $region8: #{tpu_custom_call.1} parent=0 // pred_region
    _
  $region9: #{tpu_custom_call.1} parent=0 // pred_fallthru
    _
  // Predicated region
  $region10: #{tpu_custom_call.1} parent=0 // pred_check
    _
  $region11: #{tpu_custom_call.1} parent=0 // pred_check_branch
    %14 = sbr.rel (0) target = $region13
  $region12: #{tpu_custom_call.1} parent=0 // pred_region
    _
  $region13: #{tpu_custom_call.1} parent=0 // pred_fallthru
    _
  // Predicated region
  $region14: #{tpu_custom_call.1} parent=0 // pred_check
    _
  $region15: #{tpu_custom_call.1} parent=0 // pred_check_branch
    %16 = sbr.rel (0) target = $region17
  $region16: #{tpu_custom_call.1} parent=0 // pred_region
    _
  $region17: #{tpu_custom_call.1} parent=0 // pred_fallthru
    _
  %s17 = smul.u32 0, 8
  %v18 = vld [vmem:[%s0] sm:$0xff]
  %v19 = vld [vmem:[%s1] sm:$0xff]
  %v20 = vld [vmem:[%s1 + $0x8] sm:$0xff]
  %v21 = vld [vmem:[%s1 + $0x10] sm:$0xff]
  %v22 = vld [vmem:[%s1 + $0x18] sm:$0xff]
  %v23 = vld [vmem:[%s2] sm:$0xff]
  %v24 = vld [vmem:[%s3] sm:$0x3]
  %vm25 = vcmask 261120
  %v27 = vsel %vm25, %v18, 0
  %29 = vmatprep.subr.mxu0 0.0
  %v30 = vand.u32 %v19, 4294901760
  %31 = vmatpush1.msra.mxu0 %v30
  %32 = vmatprep.subr.mxu0 0.0
  %v33 = vand.u32 %v20, 4294901760
  %34 = vmatpush1.msra.mxu0 %v33
  %35 = vmatprep.subr.mxu0 0.0
  %v36 = vand.u32 %v21, 4294901760
  %37 = vmatpush1.msra.mxu0 %v36
  %38 = vmatprep.subr.mxu0 0.0
  %v39 = vand.u32 %v22, 4294901760
  %40 = vmatpush1.msra.mxu0 %v39
  %41 = vmatprep.subr.mxu0 0.0
  %42 = vmatpush1.msra.mxu0 0.0
  %43 = vmatprep.subr.mxu0 0.0
  %44 = vmatpush1.msra.mxu0 0.0
  %45 = vmatprep.subr.mxu0 0.0
  %46 = vmatpush1.msra.mxu0 0.0
  %47 = vmatprep.subr.mxu0 0.0
  %48 = vmatpush1.msra.mxu0 0.0
  %49 = vmatprep.subr.mxu0 0.0
  %50 = vmatpush1.msra.mxu0 0.0
  %51 = vmatprep.subr.mxu0 0.0
  %52 = vmatpush1.msra.mxu0 0.0
  %53 = vmatprep.subr.mxu0 0.0
  %54 = vmatpush1.msra.mxu0 0.0
  %55 = vmatprep.subr.mxu0 0.0
  %56 = vmatpush1.msra.mxu0 0.0
  %57 = vmatprep.subr.mxu0 0.0
  %58 = vmatpush1.msra.mxu0 0.0
  %59 = vmatprep.subr.mxu0 0.0
  %60 = vmatpush1.msra.mxu0 0.0
  %61 = vmatprep.subr.mxu0 0.0
  %62 = vmatpush1.msra.mxu0 0.0
  %63 = vmatprep.subr.mxu0 0.0
  %64 = vmatpush1.msra.mxu0 0.0
  %65 = vmatprep.subr.mxu0 0.0
  %66 = vmatpush1.msra.mxu0 0.0
  %67 = vmatprep.subr.mxu0 0.0
  %68 = vmatpush1.msra.mxu0 0.0
  %69 = vmatprep.subr.mxu0 0.0
  %70 = vmatpush1.msra.mxu0 0.0
  %71 = vmatprep.subr.mxu0 0.0
  %72 = vmatpush1.msra.mxu0 0.0
  %73 = vmatprep.subr.mxu0 0.0
  %74 = vmatpush1.msra.mxu0 0.0
  %75 = vmatprep.subr.mxu0 0.0
  %76 = vmatpush1.msra.mxu0 0.0
  %77 = vmatprep.subr.mxu0 0.0
  %78 = vmatpush1.msra.mxu0 0.0
  %79 = vmatprep.subr.mxu0 0.0
  %80 = vmatpush1.msra.mxu0 0.0
  %81 = vmatprep.subr.mxu0 0.0
  %82 = vmatpush1.msra.mxu0 0.0
  %83 = vmatprep.subr.mxu0 0.0
  %84 = vmatpush1.msra.mxu0 0.0
  %85 = vmatprep.subr.mxu0 0.0
  %86 = vmatpush1.msra.mxu0 0.0
  %87 = vmatprep.subr.mxu0 0.0
  %88 = vmatpush1.msra.mxu0 0.0
  %89 = vmatprep.subr.mxu0 0.0
  %90 = vmatpush1.msra.mxu0 0.0
  %91 = vmatprep.subr.mxu0 0.0
  %92 = vmatpush1.msra.mxu0 0.0
  %93 = vmatprep.subr.mxu0 0.0
  %94 = vmatpush1.msra.mxu0 0.0
  %95 = vmatprep.subr.mxu0 0.0
  %96 = vmatpush1.msra.mxu0 0.0
  %97 = vmatprep.mubr.f32.mxu0 0.0
  %v98 = vand.u32 %v27, 4294901760
  %v99 = vsub.f32 %v27, %v98
  %v100 = vand.u32 %v99, 4294901760
  %v101 = vsub.f32 %v99, %v100
  %v102 = vand.u32 %v101, 4294901760
  %103 = vmatmul.mubr.f32.gmra.mrb[0].mxu0 %v102
  %v104 = vpop.f32.mrb[0].mxu0
  %v105 = vadd.f32 0.0, %v104
  %v106 = vpop.f32.mrb[0].mxu0
  %107 = vdwg.mxu0
  %108 = vmatprep.subr.mxu0 0.0
  %v109 = vand.u32 %v19, 4294901760
  %v110 = vsub.f32 %v19, %v109
  %v111 = vand.u32 %v110, 4294901760
  %v112 = vsub.f32 %v110, %v111
  %v113 = vand.u32 %v112, 4294901760
  %114 = vmatpush1.msra.mxu0 %v113
  %115 = vmatprep.subr.mxu0 0.0
  %v116 = vand.u32 %v20, 4294901760
  %v117 = vsub.f32 %v20, %v116
  %v118 = vand.u32 %v117, 4294901760
  %v119 = vsub.f32 %v117, %v118
  %v120 = vand.u32 %v119, 4294901760
  %121 = vmatpush1.msra.mxu0 %v120
  %122 = vmatprep.subr.mxu0 0.0
  %v123 = vand.u32 %v21, 4294901760
  %v124 = vsub.f32 %v21, %v123
  %v125 = vand.u32 %v124, 4294901760
  %v126 = vsub.f32 %v124, %v125
  %v127 = vand.u32 %v126, 4294901760
  %128 = vmatpush1.msra.mxu0 %v127
  %129 = vmatprep.subr.mxu0 0.0
  %v130 = vand.u32 %v22, 4294901760
  %v131 = vsub.f32 %v22, %v130
  %v132 = vand.u32 %v131, 4294901760
  %v133 = vsub.f32 %v131, %v132
  %v134 = vand.u32 %v133, 4294901760
  %135 = vmatpush1.msra.mxu0 %v134
  %136 = vmatprep.subr.mxu0 0.0
  %137 = vmatpush1.msra.mxu0 0.0
  %138 = vmatprep.subr.mxu0 0.0
  %139 = vmatpush1.msra.mxu0 0.0
  %140 = vmatprep.subr.mxu0 0.0
  %141 = vmatpush1.msra.mxu0 0.0
  %142 = vmatprep.subr.mxu0 0.0
  %143 = vmatpush1.msra.mxu0 0.0
  %144 = vmatprep.subr.mxu0 0.0
  %145 = vmatpush1.msra.mxu0 0.0
  %146 = vmatprep.subr.mxu0 0.0
  %147 = vmatpush1.msra.mxu0 0.0
  %148 = vmatprep.subr.mxu0 0.0
  %149 = vmatpush1.msra.mxu0 0.0
  %150 = vmatprep.subr.mxu0 0.0
  %151 = vmatpush1.msra.mxu0 0.0
  %152 = vmatprep.subr.mxu0 0.0
  %153 = vmatpush1.msra.mxu0 0.0
  %154 = vmatprep.subr.mxu0 0.0
  %155 = vmatpush1.msra.mxu0 0.0
  %156 = vmatprep.subr.mxu0 0.0
  %157 = vmatpush1.msra.mxu0 0.0
  %158 = vmatprep.subr.mxu0 0.0
  %159 = vmatpush1.msra.mxu0 0.0
  %160 = vmatprep.subr.mxu0 0.0
  %161 = vmatpush1.msra.mxu0 0.0
  %162 = vmatprep.subr.mxu0 0.0
  %163 = vmatpush1.msra.mxu0 0.0
  %164 = vmatprep.subr.mxu0 0.0
  %165 = vmatpush1.msra.mxu0 0.0
  %166 = vmatprep.subr.mxu0 0.0
  %167 = vmatpush1.msra.mxu0 0.0
  %168 = vmatprep.subr.mxu0 0.0
  %169 = vmatpush1.msra.mxu0 0.0
  %170 = vmatprep.subr.mxu0 0.0
  %171 = vmatpush1.msra.mxu0 0.0
  %172 = vmatprep.subr.mxu0 0.0
  %173 = vmatpush1.msra.mxu0 0.0
  %174 = vmatprep.subr.mxu0 0.0
  %175 = vmatpush1.msra.mxu0 0.0
  %176 = vmatprep.subr.mxu0 0.0
  %177 = vmatpush1.msra.mxu0 0.0
  %178 = vmatprep.subr.mxu0 0.0
  %179 = vmatpush1.msra.mxu0 0.0
  %180 = vmatprep.subr.mxu0 0.0
  %181 = vmatpush1.msra.mxu0 0.0
  %182 = vmatprep.subr.mxu0 0.0
  %183 = vmatpush1.msra.mxu0 0.0
  %184 = vmatprep.subr.mxu0 0.0
  %185 = vmatpush1.msra.mxu0 0.0
  %186 = vmatprep.subr.mxu0 0.0
  %187 = vmatpush1.msra.mxu0 0.0
  %188 = vmatprep.subr.mxu0 0.0
  %189 = vmatpush1.msra.mxu0 0.0
  %190 = vmatprep.subr.mxu0 0.0
  %191 = vmatpush1.msra.mxu0 0.0
  %192 = vmatprep.mubr.f32.mxu0 0.0
  %v193 = vand.u32 %v27, 4294901760
  %194 = vmatmul.mubr.f32.gmra.mrb[0].mxu0 %v193
  %v195 = vpop.f32.mrb[0].mxu0
  %v196 = vadd.f32 %v105, %v195
  %v197 = vpop.f32.mrb[0].mxu0
  %198 = vdwg.mxu0
  %199 = vmatprep.subr.mxu0 0.0
  %v200 = vand.u32 %v19, 4294901760
  %v201 = vsub.f32 %v19, %v200
  %202 = vmatpush1.msra.mxu0 %v201
  %203 = vmatprep.subr.mxu0 0.0
  %v204 = vand.u32 %v20, 4294901760
  %v205 = vsub.f32 %v20, %v204
  %206 = vmatpush1.msra.mxu0 %v205
  %207 = vmatprep.subr.mxu0 0.0
  %v208 = vand.u32 %v21, 4294901760
  %v209 = vsub.f32 %v21, %v208
  %210 = vmatpush1.msra.mxu0 %v209
  %211 = vmatprep.subr.mxu0 0.0
  %v212 = vand.u32 %v22, 4294901760
  %v213 = vsub.f32 %v22, %v212
  %214 = vmatpush1.msra.mxu0 %v213
  %215 = vmatprep.subr.mxu0 0.0
  %216 = vmatpush1.msra.mxu0 0.0
  %217 = vmatprep.subr.mxu0 0.0
  %218 = vmatpush1.msra.mxu0 0.0
  %219 = vmatprep.subr.mxu0 0.0
  %220 = vmatpush1.msra.mxu0 0.0
  %221 = vmatprep.subr.mxu0 0.0
  %222 = vmatpush1.msra.mxu0 0.0
  %223 = vmatprep.subr.mxu0 0.0
  %224 = vmatpush1.msra.mxu0 0.0
  %225 = vmatprep.subr.mxu0 0.0
  %226 = vmatpush1.msra.mxu0 0.0
  %227 = vmatprep.subr.mxu0 0.0
  %228 = vmatpush1.msra.mxu0 0.0
  %229 = vmatprep.subr.mxu0 0.0
  %230 = vmatpush1.msra.mxu0 0.0
  %231 = vmatprep.subr.mxu0 0.0
  %232 = vmatpush1.msra.mxu0 0.0
  %233 = vmatprep.subr.mxu0 0.0
  %234 = vmatpush1.msra.mxu0 0.0
  %235 = vmatprep.subr.mxu0 0.0
  %236 = vmatpush1.msra.mxu0 0.0
  %237 = vmatprep.subr.mxu0 0.0
  %238 = vmatpush1.msra.mxu0 0.0
  %239 = vmatprep.subr.mxu0 0.0
  %240 = vmatpush1.msra.mxu0 0.0
  %241 = vmatprep.subr.mxu0 0.0
  %242 = vmatpush1.msra.mxu0 0.0
  %243 = vmatprep.subr.mxu0 0.0
  %244 = vmatpush1.msra.mxu0 0.0
  %245 = vmatprep.subr.mxu0 0.0
  %246 = vmatpush1.msra.mxu0 0.0
  %247 = vmatprep.subr.mxu0 0.0
  %248 = vmatpush1.msra.mxu0 0.0
  %249 = vmatprep.subr.mxu0 0.0
  %250 = vmatpush1.msra.mxu0 0.0
  %251 = vmatprep.subr.mxu0 0.0
  %252 = vmatpush1.msra.mxu0 0.0
  %253 = vmatprep.subr.mxu0 0.0
  %254 = vmatpush1.msra.mxu0 0.0
  %255 = vmatprep.subr.mxu0 0.0
  %256 = vmatpush1.msra.mxu0 0.0
  %257 = vmatprep.subr.mxu0 0.0
  %258 = vmatpush1.msra.mxu0 0.0
  %259 = vmatprep.subr.mxu0 0.0
  %260 = vmatpush1.msra.mxu0 0.0
  %261 = vmatprep.subr.mxu0 0.0
  %262 = vmatpush1.msra.mxu0 0.0
  %263 = vmatprep.subr.mxu0 0.0
  %264 = vmatpush1.msra.mxu0 0.0
  %265 = vmatprep.subr.mxu0 0.0
  %266 = vmatpush1.msra.mxu0 0.0
  %267 = vmatprep.subr.mxu0 0.0
  %268 = vmatpush1.msra.mxu0 0.0
  %269 = vmatprep.subr.mxu0 0.0
  %270 = vmatpush1.msra.mxu0 0.0
  %271 = vmatprep.mubr.f32.mxu0 0.0
  %v272 = vand.u32 %v27, 4294901760
  %v273 = vsub.f32 %v27, %v272
  %274 = vmatmul.mubr.f32.gmra.mrb[0].mxu0 %v273
  %v275 = vpop.f32.mrb[0].mxu0
  %v276 = vadd.f32 %v196, %v275
  %v277 = vpop.f32.mrb[0].mxu0
  %278 = vdwg.mxu0
  %279 = vmatprep.subr.mxu0 0.0
  %v280 = vand.u32 %v19, 4294901760
  %281 = vmatpush1.msra.mxu0 %v280
  %282 = vmatprep.subr.mxu0 0.0
  %v283 = vand.u32 %v20, 4294901760
  %284 = vmatpush1.msra.mxu0 %v283
  %285 = vmatprep.subr.mxu0 0.0
  %v286 = vand.u32 %v21, 4294901760
  %287 = vmatpush1.msra.mxu0 %v286
  %288 = vmatprep.subr.mxu0 0.0
  %v289 = vand.u32 %v22, 4294901760
  %290 = vmatpush1.msra.mxu0 %v289
  %291 = vmatprep.subr.mxu0 0.0
  %292 = vmatpush1.msra.mxu0 0.0
  %293 = vmatprep.subr.mxu0 0.0
  %294 = vmatpush1.msra.mxu0 0.0
  %295 = vmatprep.subr.mxu0 0.0
  %296 = vmatpush1.msra.mxu0 0.0
  %297 = vmatprep.subr.mxu0 0.0
  %298 = vmatpush1.msra.mxu0 0.0
  %299 = vmatprep.subr.mxu0 0.0
  %300 = vmatpush1.msra.mxu0 0.0
  %301 = vmatprep.subr.mxu0 0.0
  %302 = vmatpush1.msra.mxu0 0.0
  %303 = vmatprep.subr.mxu0 0.0
  %304 = vmatpush1.msra.mxu0 0.0
  %305 = vmatprep.subr.mxu0 0.0
  %306 = vmatpush1.msra.mxu0 0.0
  %307 = vmatprep.subr.mxu0 0.0
  %308 = vmatpush1.msra.mxu0 0.0
  %309 = vmatprep.subr.mxu0 0.0
  %310 = vmatpush1.msra.mxu0 0.0
  %311 = vmatprep.subr.mxu0 0.0
  %312 = vmatpush1.msra.mxu0 0.0
  %313 = vmatprep.subr.mxu0 0.0
  %314 = vmatpush1.msra.mxu0 0.0
  %315 = vmatprep.subr.mxu0 0.0
  %316 = vmatpush1.msra.mxu0 0.0
  %317 = vmatprep.subr.mxu0 0.0
  %318 = vmatpush1.msra.mxu0 0.0
  %319 = vmatprep.subr.mxu0 0.0
  %320 = vmatpush1.msra.mxu0 0.0
  %321 = vmatprep.subr.mxu0 0.0
  %322 = vmatpush1.msra.mxu0 0.0
  %323 = vmatprep.subr.mxu0 0.0
  %324 = vmatpush1.msra.mxu0 0.0
  %325 = vmatprep.subr.mxu0 0.0
  %326 = vmatpush1.msra.mxu0 0.0
  %327 = vmatprep.subr.mxu0 0.0
  %328 = vmatpush1.msra.mxu0 0.0
  %329 = vmatprep.subr.mxu0 0.0
  %330 = vmatpush1.msra.mxu0 0.0
  %331 = vmatprep.subr.mxu0 0.0
  %332 = vmatpush1.msra.mxu0 0.0
  %333 = vmatprep.subr.mxu0 0.0
  %334 = vmatpush1.msra.mxu0 0.0
  %335 = vmatprep.subr.mxu0 0.0
  %336 = vmatpush1.msra.mxu0 0.0
  %337 = vmatprep.subr.mxu0 0.0
  %338 = vmatpush1.msra.mxu0 0.0
  %339 = vmatprep.subr.mxu0 0.0
  %340 = vmatpush1.msra.mxu0 0.0
  %341 = vmatprep.subr.mxu0 0.0
  %342 = vmatpush1.msra.mxu0 0.0
  %343 = vmatprep.subr.mxu0 0.0
  %344 = vmatpush1.msra.mxu0 0.0
  %345 = vmatprep.subr.mxu0 0.0
  %346 = vmatpush1.msra.mxu0 0.0
  %347 = vmatprep.mubr.f32.mxu0 0.0
  %v348 = vand.u32 %v27, 4294901760
  %v349 = vsub.f32 %v27, %v348
  %v350 = vand.u32 %v349, 4294901760
  %351 = vmatmul.mubr.f32.gmra.mrb[0].mxu0 %v350
  %v352 = vpop.f32.mrb[0].mxu0
  %v353 = vadd.f32 %v276, %v352
  %v354 = vpop.f32.mrb[0].mxu0
  %355 = vdwg.mxu0
  %356 = vmatprep.subr.mxu0 0.0
  %v357 = vand.u32 %v19, 4294901760
  %v358 = vsub.f32 %v19, %v357
  %v359 = vand.u32 %v358, 4294901760
  %360 = vmatpush1.msra.mxu0 %v359
  %361 = vmatprep.subr.mxu0 0.0
  %v362 = vand.u32 %v20, 4294901760
  %v363 = vsub.f32 %v20, %v362
  %v364 = vand.u32 %v363, 4294901760
  %365 = vmatpush1.msra.mxu0 %v364
  %366 = vmatprep.subr.mxu0 0.0
  %v367 = vand.u32 %v21, 4294901760
  %v368 = vsub.f32 %v21, %v367
  %v369 = vand.u32 %v368, 4294901760
  %370 = vmatpush1.msra.mxu0 %v369
  %371 = vmatprep.subr.mxu0 0.0
  %v372 = vand.u32 %v22, 4294901760
  %v373 = vsub.f32 %v22, %v372
  %v374 = vand.u32 %v373, 4294901760
  %375 = vmatpush1.msra.mxu0 %v374
  %376 = vmatprep.subr.mxu0 0.0
  %377 = vmatpush1.msra.mxu0 0.0
  %378 = vmatprep.subr.mxu0 0.0
  %379 = vmatpush1.msra.mxu0 0.0
  %380 = vmatprep.subr.mxu0 0.0
  %381 = vmatpush1.msra.mxu0 0.0
  %382 = vmatprep.subr.mxu0 0.0
  %383 = vmatpush1.msra.mxu0 0.0
  %384 = vmatprep.subr.mxu0 0.0
  %385 = vmatpush1.msra.mxu0 0.0
  %386 = vmatprep.subr.mxu0 0.0
  %387 = vmatpush1.msra.mxu0 0.0
  %388 = vmatprep.subr.mxu0 0.0
  %389 = vmatpush1.msra.mxu0 0.0
  %390 = vmatprep.subr.mxu0 0.0
  %391 = vmatpush1.msra.mxu0 0.0
  %392 = vmatprep.subr.mxu0 0.0
  %393 = vmatpush1.msra.mxu0 0.0
  %394 = vmatprep.subr.mxu0 0.0
  %395 = vmatpush1.msra.mxu0 0.0
  %396 = vmatprep.subr.mxu0 0.0
  %397 = vmatpush1.msra.mxu0 0.0
  %398 = vmatprep.subr.mxu0 0.0
  %399 = vmatpush1.msra.mxu0 0.0
  %400 = vmatprep.subr.mxu0 0.0
  %401 = vmatpush1.msra.mxu0 0.0
  %402 = vmatprep.subr.mxu0 0.0
  %403 = vmatpush1.msra.mxu0 0.0
  %404 = vmatprep.subr.mxu0 0.0
  %405 = vmatpush1.msra.mxu0 0.0
  %406 = vmatprep.subr.mxu0 0.0
  %407 = vmatpush1.msra.mxu0 0.0
  %408 = vmatprep.subr.mxu0 0.0
  %409 = vmatpush1.msra.mxu0 0.0
  %410 = vmatprep.subr.mxu0 0.0
  %411 = vmatpush1.msra.mxu0 0.0
  %412 = vmatprep.subr.mxu0 0.0
  %413 = vmatpush1.msra.mxu0 0.0
  %414 = vmatprep.subr.mxu0 0.0
  %415 = vmatpush1.msra.mxu0 0.0
  %416 = vmatprep.subr.mxu0 0.0
  %417 = vmatpush1.msra.mxu0 0.0
  %418 = vmatprep.subr.mxu0 0.0
  %419 = vmatpush1.msra.mxu0 0.0
  %420 = vmatprep.subr.mxu0 0.0
  %421 = vmatpush1.msra.mxu0 0.0
  %422 = vmatprep.subr.mxu0 0.0
  %423 = vmatpush1.msra.mxu0 0.0
  %424 = vmatprep.subr.mxu0 0.0
  %425 = vmatpush1.msra.mxu0 0.0
  %426 = vmatprep.subr.mxu0 0.0
  %427 = vmatpush1.msra.mxu0 0.0
  %428 = vmatprep.subr.mxu0 0.0
  %429 = vmatpush1.msra.mxu0 0.0
  %430 = vmatprep.subr.mxu0 0.0
  %431 = vmatpush1.msra.mxu0 0.0
  %432 = vmatprep.mubr.f32.mxu0 0.0
  %v433 = vand.u32 %v27, 4294901760
  %434 = vmatmul.mubr.f32.gmra.mrb[0].mxu0 %v433
  %v435 = vpop.f32.mrb[0].mxu0
  %v436 = vadd.f32 %v353, %v435
  %v437 = vpop.f32.mrb[0].mxu0
  %438 = vdwg.mxu0
  %439 = vmatprep.subr.mxu0 0.0
  %v440 = vand.u32 %v19, 4294901760
  %441 = vmatpush1.msra.mxu0 %v440
  %442 = vmatprep.subr.mxu0 0.0
  %v443 = vand.u32 %v20, 4294901760
  %444 = vmatpush1.msra.mxu0 %v443
  %445 = vmatprep.subr.mxu0 0.0
  %v446 = vand.u32 %v21, 4294901760
  %447 = vmatpush1.msra.mxu0 %v446
  %448 = vmatprep.subr.mxu0 0.0
  %v449 = vand.u32 %v22, 4294901760
  %450 = vmatpush1.msra.mxu0 %v449
  %451 = vmatprep.subr.mxu0 0.0
  %452 = vmatpush1.msra.mxu0 0.0
  %453 = vmatprep.subr.mxu0 0.0
  %454 = vmatpush1.msra.mxu0 0.0
  %455 = vmatprep.subr.mxu0 0.0
  %456 = vmatpush1.msra.mxu0 0.0
  %457 = vmatprep.subr.mxu0 0.0
  %458 = vmatpush1.msra.mxu0 0.0
  %459 = vmatprep.subr.mxu0 0.0
  %460 = vmatpush1.msra.mxu0 0.0
  %461 = vmatprep.subr.mxu0 0.0
  %462 = vmatpush1.msra.mxu0 0.0
  %463 = vmatprep.subr.mxu0 0.0
  %464 = vmatpush1.msra.mxu0 0.0
  %465 = vmatprep.subr.mxu0 0.0
  %466 = vmatpush1.msra.mxu0 0.0
  %467 = vmatprep.subr.mxu0 0.0
  %468 = vmatpush1.msra.mxu0 0.0
  %469 = vmatprep.subr.mxu0 0.0
  %470 = vmatpush1.msra.mxu0 0.0
  %471 = vmatprep.subr.mxu0 0.0
  %472 = vmatpush1.msra.mxu0 0.0
  %473 = vmatprep.subr.mxu0 0.0
  %474 = vmatpush1.msra.mxu0 0.0
  %475 = vmatprep.subr.mxu0 0.0
  %476 = vmatpush1.msra.mxu0 0.0
  %477 = vmatprep.subr.mxu0 0.0
  %478 = vmatpush1.msra.mxu0 0.0
  %479 = vmatprep.subr.mxu0 0.0
  %480 = vmatpush1.msra.mxu0 0.0
  %481 = vmatprep.subr.mxu0 0.0
  %482 = vmatpush1.msra.mxu0 0.0
  %483 = vmatprep.subr.mxu0 0.0
  %484 = vmatpush1.msra.mxu0 0.0
  %485 = vmatprep.subr.mxu0 0.0
  %486 = vmatpush1.msra.mxu0 0.0
  %487 = vmatprep.subr.mxu0 0.0
  %488 = vmatpush1.msra.mxu0 0.0
  %489 = vmatprep.subr.mxu0 0.0
  %490 = vmatpush1.msra.mxu0 0.0
  %491 = vmatprep.subr.mxu0 0.0
  %492 = vmatpush1.msra.mxu0 0.0
  %493 = vmatprep.subr.mxu0 0.0
  %494 = vmatpush1.msra.mxu0 0.0
  %495 = vmatprep.subr.mxu0 0.0
  %496 = vmatpush1.msra.mxu0 0.0
  %497 = vmatprep.subr.mxu0 0.0
  %498 = vmatpush1.msra.mxu0 0.0
  %499 = vmatprep.subr.mxu0 0.0
  %500 = vmatpush1.msra.mxu0 0.0
  %501 = vmatprep.subr.mxu0 0.0
  %502 = vmatpush1.msra.mxu0 0.0
  %503 = vmatprep.subr.mxu0 0.0
  %504 = vmatpush1.msra.mxu0 0.0
  %505 = vmatprep.subr.mxu0 0.0
  %506 = vmatpush1.msra.mxu0 0.0
  %507 = vmatprep.mubr.f32.mxu0 0.0
  %v508 = vand.u32 %v27, 4294901760
  %509 = vmatmul.mubr.f32.gmra.mrb[0].mxu0 %v508
  %v510 = vpop.f32.mrb[0].mxu0
  %v511 = vadd.f32 %v436, %v510
  %v512 = vpop.f32.mrb[0].mxu0
  %513 = vdwg.mxu0
  %v514 = vmul.f32 %v18, %v18
  %v515 = vsel %vm25, %v514, 0.0
  %516 = vadd.xlane.f32.xlu0 %v515
  %v517 = vpop.xlane.xlu0 %516
  %v518 = vsel %vm25, %v18, 0.0
  %519 = vadd.xlane.f32.xlu0 %v518
  %v520 = vpop.xlane.xlu0 %519
  %v521 = vmul.f32 %v19, %v19
  %v522 = vmul.f32 %v20, %v20
  %v523 = vmul.f32 %v21, %v21
  %v524 = vmul.f32 %v22, %v22
  %vm525 = vcmask 64512
  %v526 = vsel %vm525, %v521, 0.0
  %v527 = vsel %vm525, %v522, 0.0
  %v528 = vadd.f32 %v526, %v527
  %v529 = vsel %vm525, %v523, 0.0
  %v530 = vadd.f32 %v528, %v529
  %v531 = vsel %vm525, %v524, 0.0
  %v532 = vadd.f32 %v530, %v531
  %v533 = vrot.slane %v532, 4
  %v534 = vadd.f32 %v532, %v533
  %v535 = vrot.slane %v534, 2
  %v536 = vadd.f32 %v534, %v535
  %v537 = vrot.slane %v536, 1
  %v538 = vadd.f32 %v536, %v537
  %v539 = vsel %vm525, %v19, 0.0
  %v540 = vsel %vm525, %v20, 0.0
  %v541 = vadd.f32 %v539, %v540
  %v542 = vsel %vm525, %v21, 0.0
  %v543 = vadd.f32 %v541, %v542
  %v544 = vsel %vm525, %v22, 0.0
  %v545 = vadd.f32 %v543, %v544
  %v546 = vrot.slane %v545, 4
  %v547 = vadd.f32 %v545, %v546
  %v548 = vrot.slane %v547, 2
  %v549 = vadd.f32 %v547, %v548
  %v550 = vrot.slane %v549, 1
  %v551 = vadd.f32 %v549, %v550
  %v552 = vadd.f32 %v517, %v538
  %v553 = vmul.f32 %v511, 2.0
  %v554 = vsub.f32 %v552, %v553
  %v555 = vsub.f32 %v520, %v551
  %v556 = vmul.f32 %v555, 0.0002
  %v557 = vadd.f32 %v554, %v556
  %v558 = vadd.f32 %v557, 3.2e-07
  %v559 = vmax.f32 %v558, 0.0
  %v560 = vrsqrt.pop %v559
  %v561 = vmul.f32 %v559, %v560
  %vm562 = vcmp.eq.f32.partialorder %v559, inf
  %v563 = vsel %vm562, %v559, %v561
  %vm564 = vcmp.eq.f32.partialorder %v559, 0.0
  %v565 = vand.u32 %v559, 2147483648
  %v566 = vsel %vm564, %v565, %v563
  %v567 = vsub.f32 0.0, %v566
  %v568 = vmul.f32 %v567, 0.5
  %570 = vset.pattern.permute.xlu0 0
  %571 = vperm.xlu0 %570, %v23
  %v572 = vpop.permute.xlu0 %571
  %v574 = vlaneseq
  %v575 = vshrl.u32 %v574, 7
  %v576 = vsub.s32 0, %v575
  %v577 = vrot.slane %v24, %v576
  %v578 = vsub.f32 %v572, %v577
  %v579 = vand.u32 2147483647, %v578
  %v580 = vadd.f32 %v579, 0.0
  %581 = vset.pattern.permute.xlu0 1
  %582 = vperm.xlu0 %581, %v23
  %v583 = vpop.permute.xlu0 %582
  %v585 = vlaneseq
  %v586 = vshrl.u32 %v585, 7
  %v587 = vsub.s32 1, %v586
  %v588 = vrot.slane %v24, %v587
  %v589 = vsub.f32 %v583, %v588
  %v590 = vand.u32 2147483647, %v589
  %v591 = vadd.f32 %v580, %v590
  %v592 = vlaneseq
  %v593 = vshrl.u32 %v592, 7
  %v594 = vstv %s17
  %v595 = vadd.s32 %v594, %v593
  %v596 = vlaneseq
  %v597 = vand.u32 %v596, 127
  %vm598 = vcmp.ne.s32.totalorder %v595, %v597
  %v599 = vmul.f32 %v568, 1.442695
  %v600 = vpow.pop %v599
  %v601 = vsel %vm598, %v600, 0.0
  %v603 = vcombine.high %v591, %v591
  %v605 = vunpack.c.l.s4 1966171168
  %v606 = vunpack.c.0.s8 %v605
  %v607 = vlaneseq
  %v608 = vshrl.u32 %v607, 7
  %v609 = vsub.s32 %v606, %v608
  %v610 = vrot.slane %v591, %v609
  %v612 = vunpack.c.l.s4 1966171168
  %v613 = vunpack.c.0.s8 %v612
  %v614 = vlaneseq
  %v615 = vshrl.u32 %v614, 7
  %v616 = vsub.s32 %v613, %v615
  %v617 = vrot.slane %v603, %v616
  %v618 = vcombine.high %v610, %v610
  %v619 = vcombine.high %v617, %v617
  %v621 = vunpack.c.l.s4 1966171168
  %v622 = vunpack.c.0.s8 %v621
  %v623 = vlaneseq
  %v624 = vshrl.u32 %v623, 7
  %v625 = vsub.s32 %v622, %v624
  %v626 = vrot.slane %v610, %v625
  %v628 = vunpack.c.l.s4 1966171168
  %v629 = vunpack.c.0.s8 %v628
  %v630 = vlaneseq
  %v631 = vshrl.u32 %v630, 7
  %v632 = vsub.s32 %v629, %v631
  %v633 = vrot.slane %v617, %v632
  %v635 = vunpack.c.l.s4 1966171168
  %v636 = vunpack.c.0.s8 %v635
  %v637 = vlaneseq
  %v638 = vshrl.u32 %v637, 7
  %v639 = vsub.s32 %v636, %v638
  %v640 = vrot.slane %v618, %v639
  %v642 = vunpack.c.l.s4 1966171168
  %v643 = vunpack.c.0.s8 %v642
  %v644 = vlaneseq
  %v645 = vshrl.u32 %v644, 7
  %v646 = vsub.s32 %v643, %v645
  %v647 = vrot.slane %v619, %v646
  %v648 = vcombine.high %v626, %v626
  %v649 = vcombine.high %v633, %v633
  %v650 = vcombine.high %v640, %v640
  %v651 = vcombine.high %v647, %v647
  %v652 = vlaneseq
  %v653 = vshrl.u32 %v652, 7
  %v654 = vsub.s32 0, %v653
  %v655 = vrot.slane %v591, %v654
  %657 = vbcast.lane.b32.xlu0 %v655, 256
  %v658 = vpop.permute.xlu0 %657
  %v659 = vlaneseq
  %v660 = vshrl.u32 %v659, 7
  %v661 = vsub.s32 1, %v660
  %v662 = vrot.slane %v591, %v661
  %664 = vbcast.lane.b32.xlu0 %v662, 256
  %v665 = vpop.permute.xlu0 %664
  %v666 = vlaneseq
  %v667 = vshrl.u32 %v666, 7
  %v668 = vsub.s32 2, %v667
  %v669 = vrot.slane %v591, %v668
  %671 = vbcast.lane.b32.xlu0 %v669, 256
  %v672 = vpop.permute.xlu0 %671
  %v673 = vlaneseq
  %v674 = vshrl.u32 %v673, 7
  %v675 = vsub.s32 3, %v674
  %v676 = vrot.slane %v591, %v675
  %678 = vbcast.lane.b32.xlu0 %v676, 256
  %v679 = vpop.permute.xlu0 %678
  %v680 = vlaneseq
  %v681 = vshrl.u32 %v680, 7
  %v682 = vsub.s32 4, %v681
  %v683 = vrot.slane %v591, %v682
  %685 = vbcast.lane.b32.xlu0 %v683, 256
  %v686 = vpop.permute.xlu0 %685
  %v687 = vlaneseq
  %v688 = vshrl.u32 %v687, 7
  %v689 = vsub.s32 5, %v688
  %v690 = vrot.slane %v591, %v689
  %692 = vbcast.lane.b32.xlu0 %v690, 256
  %v693 = vpop.permute.xlu0 %692
  %v694 = vlaneseq
  %v695 = vshrl.u32 %v694, 7
  %v696 = vsub.s32 6, %v695
  %v697 = vrot.slane %v591, %v696
  %699 = vbcast.lane.b32.xlu0 %v697, 256
  %v700 = vpop.permute.xlu0 %699
  %v701 = vlaneseq
  %v702 = vshrl.u32 %v701, 7
  %v703 = vsub.s32 7, %v702
  %v704 = vrot.slane %v591, %v703
  %706 = vbcast.lane.b32.xlu0 %v704, 256
  %v707 = vpop.permute.xlu0 %706
  %v708 = vlaneseq
  %v709 = vshrl.u32 %v708, 7
  %v710 = vsub.s32 0, %v709
  %v711 = vrot.slane %v626, %v710
  %v712 = vlaneseq
  %v713 = vshrl.u32 %v712, 7
  %v714 = vsub.s32 0, %v713
  %v715 = vrot.slane %v640, %v714
  %v716 = vlaneseq
  %v717 = vshrl.u32 %v716, 7
  %v718 = vsub.s32 0, %v717
  %v719 = vrot.slane %v648, %v718
  %v720 = vlaneseq
  %v721 = vshrl.u32 %v720, 7
  %v722 = vsub.s32 0, %v721
  %v723 = vrot.slane %v650, %v722
  %v724 = vlaneseq
  %v725 = vshrl.u32 %v724, 7
  %v726 = vsub.s32 0, %v725
  %v727 = vrot.slane %v633, %v726
  %v728 = vlaneseq
  %v729 = vshrl.u32 %v728, 7
  %v730 = vsub.s32 0, %v729
  %v731 = vrot.slane %v647, %v730
  %v732 = vlaneseq
  %v733 = vshrl.u32 %v732, 7
  %v734 = vsub.s32 0, %v733
  %v735 = vrot.slane %v649, %v734
  %v736 = vlaneseq
  %v737 = vshrl.u32 %v736, 7
  %v738 = vsub.s32 0, %v737
  %v739 = vrot.slane %v651, %v738
  %vm748 = vcmp.ge.f32.partialorder %v711, %v658
  %vm749 = vcmp.ge.f32.partialorder %v715, %v665
  %vm750 = vcmp.ge.f32.partialorder %v719, %v672
  %vm751 = vcmp.ge.f32.partialorder %v723, %v679
  %vm752 = vcmp.ge.f32.partialorder %v727, %v686
  %vm753 = vcmp.ge.f32.partialorder %v731, %v693
  %vm754 = vcmp.ge.f32.partialorder %v735, %v700
  %vm755 = vcmp.ge.f32.partialorder %v739, %v707
  %v757 = vcombine.high %v601, %v601
  %v759 = vunpack.c.l.s4 1966171168
  %v760 = vunpack.c.0.s8 %v759
  %v761 = vlaneseq
  %v762 = vshrl.u32 %v761, 7
  %v763 = vsub.s32 %v760, %v762
  %v764 = vrot.slane %v601, %v763
  %v766 = vunpack.c.l.s4 1966171168
  %v767 = vunpack.c.0.s8 %v766
  %v768 = vlaneseq
  %v769 = vshrl.u32 %v768, 7
  %v770 = vsub.s32 %v767, %v769
  %v771 = vrot.slane %v757, %v770
  %v772 = vcombine.high %v764, %v764
  %v773 = vcombine.high %v771, %v771
  %v775 = vunpack.c.l.s4 1966171168
  %v776 = vunpack.c.0.s8 %v775
  %v777 = vlaneseq
  %v778 = vshrl.u32 %v777, 7
  %v779 = vsub.s32 %v776, %v778
  %v780 = vrot.slane %v764, %v779
  %v782 = vunpack.c.l.s4 1966171168
  %v783 = vunpack.c.0.s8 %v782
  %v784 = vlaneseq
  %v785 = vshrl.u32 %v784, 7
  %v786 = vsub.s32 %v783, %v785
  %v787 = vrot.slane %v771, %v786
  %v789 = vunpack.c.l.s4 1966171168
  %v790 = vunpack.c.0.s8 %v789
  %v791 = vlaneseq
  %v792 = vshrl.u32 %v791, 7
  %v793 = vsub.s32 %v790, %v792
  %v794 = vrot.slane %v772, %v793
  %v796 = vunpack.c.l.s4 1966171168
  %v797 = vunpack.c.0.s8 %v796
  %v798 = vlaneseq
  %v799 = vshrl.u32 %v798, 7
  %v800 = vsub.s32 %v797, %v799
  %v801 = vrot.slane %v773, %v800
  %v802 = vcombine.high %v780, %v780
  %v803 = vcombine.high %v787, %v787
  %v804 = vcombine.high %v794, %v794
  %v805 = vcombine.high %v801, %v801
  %v806 = vlaneseq
  %v807 = vshrl.u32 %v806, 7
  %v808 = vsub.s32 0, %v807
  %v809 = vrot.slane %v780, %v808
  %v810 = vlaneseq
  %v811 = vshrl.u32 %v810, 7
  %v812 = vsub.s32 0, %v811
  %v813 = vrot.slane %v794, %v812
  %v814 = vlaneseq
  %v815 = vshrl.u32 %v814, 7
  %v816 = vsub.s32 0, %v815
  %v817 = vrot.slane %v802, %v816
  %v818 = vlaneseq
  %v819 = vshrl.u32 %v818, 7
  %v820 = vsub.s32 0, %v819
  %v821 = vrot.slane %v804, %v820
  %v822 = vlaneseq
  %v823 = vshrl.u32 %v822, 7
  %v824 = vsub.s32 0, %v823
  %v825 = vrot.slane %v787, %v824
  %v826 = vlaneseq
  %v827 = vshrl.u32 %v826, 7
  %v828 = vsub.s32 0, %v827
  %v829 = vrot.slane %v801, %v828
  %v830 = vlaneseq
  %v831 = vshrl.u32 %v830, 7
  %v832 = vsub.s32 0, %v831
  %v833 = vrot.slane %v803, %v832
  %v834 = vlaneseq
  %v835 = vshrl.u32 %v834, 7
  %v836 = vsub.s32 0, %v835
  %v837 = vrot.slane %v805, %v836
  %v846 = vsel %vm748, %v809, 0.0
  %v847 = vsel %vm749, %v813, 0.0
  %v848 = vsel %vm750, %v817, 0.0
  %v849 = vsel %vm751, %v821, 0.0
  %v850 = vsel %vm752, %v825, 0.0
  %v851 = vsel %vm753, %v829, 0.0
  %v852 = vsel %vm754, %v833, 0.0
  %v853 = vsel %vm755, %v837, 0.0
  %v854 = vsel %vm525, %v846, 0.0
  %855 = vadd.xlane.f32.xlu0 %v854
  %v856 = vpop.xlane.xlu0 %855
  %v857 = vsel %vm525, %v847, 0.0
  %858 = vadd.xlane.f32.xlu0 %v857
  %v859 = vpop.xlane.xlu0 %858
  %v860 = vsel %vm525, %v848, 0.0
  %861 = vadd.xlane.f32.xlu0 %v860
  %v862 = vpop.xlane.xlu0 %861
  %v863 = vsel %vm525, %v849, 0.0
  %864 = vadd.xlane.f32.xlu0 %v863
  %v865 = vpop.xlane.xlu0 %864
  %v866 = vsel %vm525, %v850, 0.0
  %867 = vadd.xlane.f32.xlu0 %v866
  %v868 = vpop.xlane.xlu0 %867
  %v869 = vsel %vm525, %v851, 0.0
  %870 = vadd.xlane.f32.xlu0 %v869
  %v871 = vpop.xlane.xlu0 %870
  %v872 = vsel %vm525, %v852, 0.0
  %873 = vadd.xlane.f32.xlu0 %v872
  %v874 = vpop.xlane.xlu0 %873
  %v875 = vsel %vm525, %v853, 0.0
  %876 = vadd.xlane.f32.xlu0 %v875
  %v877 = vpop.xlane.xlu0 %876
  %v878 = vadd.f32 %v856, 0.001
  %v879 = vadd.f32 %v859, 0.001
  %v880 = vadd.f32 %v862, 0.001
  %v881 = vadd.f32 %v865, 0.001
  %v882 = vadd.f32 %v868, 0.001
  %v883 = vadd.f32 %v871, 0.001
  %v884 = vadd.f32 %v874, 0.001
  %v885 = vadd.f32 %v877, 0.001
  %v886 = vlog2.pop %v878
  %v887 = vmul.f32 %v886, 0.6931472
  %v888 = vlog2.pop %v879
  %v889 = vmul.f32 %v888, 0.6931472
  %v890 = vlog2.pop %v880
  %v891 = vmul.f32 %v890, 0.6931472
  %v892 = vlog2.pop %v881
  %v893 = vmul.f32 %v892, 0.6931472
  %v894 = vlog2.pop %v882
  %v895 = vmul.f32 %v894, 0.6931472
  %v896 = vlog2.pop %v883
  %v897 = vmul.f32 %v896, 0.6931472
  %v898 = vlog2.pop %v884
  %v899 = vmul.f32 %v898, 0.6931472
  %v900 = vlog2.pop %v885
  %v901 = vmul.f32 %v900, 0.6931472
  %v910 = vlaneseq
  %v911 = vshrl.u32 %v910, 7
  %v912 = vsub.s32 %v597, %v911
  %v913 = vrot.slane %v887, %v912
  %v914 = vlaneseq
  %v915 = vshrl.u32 %v914, 7
  %v916 = vsub.s32 %v597, %v915
  %v917 = vrot.slane %v889, %v916
  %v918 = vlaneseq
  %v919 = vshrl.u32 %v918, 7
  %v920 = vsub.s32 %v597, %v919
  %v921 = vrot.slane %v891, %v920
  %v922 = vlaneseq
  %v923 = vshrl.u32 %v922, 7
  %v924 = vsub.s32 %v597, %v923
  %v925 = vrot.slane %v893, %v924
  %v926 = vlaneseq
  %v927 = vshrl.u32 %v926, 7
  %v928 = vsub.s32 %v597, %v927
  %v929 = vrot.slane %v895, %v928
  %v930 = vlaneseq
  %v931 = vshrl.u32 %v930, 7
  %v932 = vsub.s32 %v597, %v931
  %v933 = vrot.slane %v897, %v932
  %v934 = vlaneseq
  %v935 = vshrl.u32 %v934, 7
  %v936 = vsub.s32 %v597, %v935
  %v937 = vrot.slane %v899, %v936
  %v938 = vlaneseq
  %v939 = vshrl.u32 %v938, 7
  %v940 = vsub.s32 %v597, %v939
  %v941 = vrot.slane %v901, %v940
  %vm942 = vcmask 1041409
  %v943 = vsel %vm942, %v917, %v913
  %vm944 = vcmask 1042434
  %v945 = vsel %vm944, %v921, %v943
  %vm946 = vcmask 1043459
  %v947 = vsel %vm946, %v925, %v945
  %vm948 = vcmask 1044484
  %v949 = vsel %vm948, %v929, %v947
  %vm950 = vcmask 1045509
  %v951 = vsel %vm950, %v933, %v949
  %vm952 = vcmask 1046534
  %v953 = vsel %vm952, %v937, %v951
  %vm954 = vcmask 1047559
  %v955 = vsel %vm954, %v941, %v953
  %v957 = vsub.f32 %v568, %v955
  %vm958 = vcmp.lt.s32.totalorder %v595, 8
  %vm959 = vmand %vm598, %vm958
  %v960 = vsel %vm959, %v957, 0.0
  %v961 = vsel %vm525, %v960, 0.0
  %962 = vadd.xlane.f32.xlu0 %v961
  %v963 = vpop.xlane.xlu0 %962
  %v964 = vadd.f32 %v963, 0.0
  %vm965 = vcmask 7168
  %966 = vst.msk [vmem:[%s4] sm:$0xff] %vm965, %v964
  // Predicated region
  $region18: #{tpu_custom_call.1} parent=0 // pred_check
    _
  $region19: #{tpu_custom_call.1} parent=0 // pred_check_branch
    %968 = sbr.rel (0) target = $region21
  $region20: #{tpu_custom_call.1} parent=0 // pred_region
    _
  $region21: #{tpu_custom_call.1} parent=0 // pred_fallthru
    _
  // Predicated region
  $region22: #{tpu_custom_call.1} parent=0 // pred_check
    _
  $region23: #{tpu_custom_call.1} parent=0 // pred_check_branch
    %970 = sbr.rel (0) target = $region25
  $region24: #{tpu_custom_call.1} parent=0 // pred_region
    _
  $region25: #{tpu_custom_call.1} parent=0 // pred_fallthru
    _

</llo_original>
